<compile_context>
chip_gen: v7x
topology: tpu7x:2x2x1
jax: 0.10.0
libtpu: 0.0.40
codegen_flags: <defaults>
</compile_context>

<pallas_src>
import math

import jax
import jax.numpy as jnp
from jax.experimental import pallas as pl
from jax.experimental.pallas import tpu as pltpu

_LANE = 128


def _gelu_kernel(x_ref, o_ref):
    x = x_ref[...].astype(jnp.float32)
    # 0.5 * x * (1 + tanh(sqrt(2/pi) * (x + 0.044715 * x^3)))
    # Folded: inner = x * (c1 + c2 * x * x), c1 = sqrt(2/pi), c2 = c1 * 0.044715
    c1 = jnp.float32(math.sqrt(2.0 / math.pi))
    c2 = jnp.float32(math.sqrt(2.0 / math.pi) * 0.044715)
    inner = x * (c1 + c2 * (x * x))
    half_x = jnp.float32(0.5) * x
    o_ref[...] = (half_x + half_x * jnp.tanh(inner)).astype(o_ref.dtype)
    # TODO(synk): for bf16 tensors on v6e/v7x, a bf16-native polynomial would
    # halve VALU pressure; kept f32 here for accuracy and v5e compatibility.


def _sublane_align(dtype):
    """Minimum row-tile multiple for a lane-dense (rows, 128) block."""
    itemsize = jnp.dtype(dtype).itemsize
    if itemsize >= 4:
        return 8
    if itemsize == 2:
        return 16
    return 32


def _round_up(v, m):
    return ((v + m - 1) // m) * m


def gelu_pallas(x, *, target_block_bytes=4 * 1024 * 1024, donate_input=False):
    orig_shape = x.shape
    dtype = x.dtype
    total = x.size
    if total == 0:
        return x

    elem_bytes = jnp.dtype(dtype).itemsize
    align = _sublane_align(dtype)

    pad_elems = (-total) % _LANE
    if pad_elems == 0:
        x_flat = x.reshape(-1)  # free (metadata only)
    else:
        # TODO(synk): replace this full-tensor pad + trailing slice with a
        # masked edge block (scalar-prefetch element count) to avoid the two
        # extra HBM passes on ragged sizes.  GELU(0) == 0 so zero-pad is safe.
        x_flat = jnp.pad(x.reshape(-1), (0, pad_elems))

    rows = x_flat.size // _LANE
    x2d = x_flat.reshape(rows, _LANE)

    # Block sizing: lane-dense (block_rows, 128) slabs,
    #  - aligned to the dtype's sublane packing,
    #  - ~target_block_bytes per block (amortizes the ~0.35 us/step overhead),
    #  - at least 2 grid steps when possible so v7x's two TensorCores both
    #    stream HBM (the grid axis is marked "parallel"),
    #  - partial edge block handled by Pallas masking (pl.cdiv grid), so no
    #    divisor search and no perf cliff on awkward row counts.
    target_rows = max(align, (target_block_bytes // (_LANE * elem_bytes)) // align * align)
    if rows <= align:
        block_rows = rows  # single full-extent block (tiny input)
    else:
        half_rows = _round_up(pl.cdiv(rows, 2), align)
        block_rows = min(target_rows, half_rows)
    grid = (pl.cdiv(rows, block_rows),)

    block_bytes = block_rows * _LANE * elem_bytes
    # in + out, double-buffered, plus headroom; >= 32 MiB so 4 MiB blocks fit
    # even on v5e (16 MiB scoped default, 128 MiB physical VMEM).
    vmem_limit = max(32 * 1024 * 1024, 4 * block_bytes + 4 * 1024 * 1024)

    alias = {0: 0} if (donate_input and pad_elems == 0) else {}

    out2d = pl.pallas_call(
        _gelu_kernel,
        out_shape=jax.ShapeDtypeStruct((rows, _LANE), dtype),
        grid_spec=pltpu.PrefetchScalarGridSpec(
            num_scalar_prefetch=0,
            grid=grid,
            in_specs=[pl.BlockSpec((block_rows, _LANE), lambda i: (i, 0))],
            out_specs=pl.BlockSpec((block_rows, _LANE), lambda i: (i, 0)),
        ),
        compiler_params=pltpu.CompilerParams(
            dimension_semantics=("parallel",),  # shards grid across v7x's 2 TCs
            vmem_limit_bytes=vmem_limit,
        ),
        cost_estimate=pl.CostEstimate(
            flops=8 * total,
            transcendentals=total,
            bytes_accessed=2 * total * elem_bytes,
        ),
        input_output_aliases=alias,
    )(x2d)

    out_flat = out2d.reshape(-1)
    if out_flat.size != total:
        out_flat = out_flat[:total]
    return out_flat.reshape(orig_shape)


def gelu_reference(x):
    c = math.sqrt(2.0 / math.pi)
    return 0.5 * x * (1.0 + jnp.tanh(c * (x + 0.044715 * jnp.power(x, 3))))


if __name__ == "__main__":
    key = jax.random.PRNGKey(0)
    k1, k2, k3 = jax.random.split(key, 3)

    # (batch, seq, hidden) transformer-style activation, f32, single block.
    x1 = jax.random.normal(k1, (2, 8, 32), dtype=jnp.float32)
    out1 = jax.block_until_ready(gelu_pallas(x1))
    ref1 = gelu_reference(x1)
    assert out1.shape == x1.shape and out1.dtype == x1.dtype
    assert jnp.allclose(out1, ref1, atol=1e-5, rtol=1e-5), "f32 mismatch"

    # f32, >1 grid step with a partial (masked) edge block.
    x2 = jax.random.normal(k2, (3, 40, 128), dtype=jnp.float32)
    out2 = jax.block_until_ready(gelu_pallas(x2))
    ref2 = gelu_reference(x2)
    assert jnp.allclose(out2, ref2, atol=1e-5, rtol=1e-5), "edge-block mismatch"

    # bf16, exercises the 16-row sublane alignment and a 2-step grid.
    x3 = jax.random.normal(k3, (4, 16, 64), dtype=jnp.bfloat16)
    out3 = jax.block_until_ready(gelu_pallas(x3))
    ref3 = gelu_reference(x3.astype(jnp.float32))
    assert out3.dtype == jnp.bfloat16
    assert jnp.allclose(out3.astype(jnp.float32), ref3, atol=2e-2, rtol=2e-2), "bf16 mismatch"

    print("KERNEL_OK")
</pallas_src>

<mosaic_0001>
module attributes {stable_mosaic.version = 11 : i64} {
  func.func @_gelu_kernel(%arg0: i32, %arg1: memref<4x128xf32, #tpu.memory_space<vmem>>, %arg2: memref<4x128xf32, #tpu.memory_space<vmem>>) attributes {dimension_semantics = [#tpu.dimension_semantics<parallel>], iteration_bounds = array<i64: 1>, scalar_prefetch = 0 : i64, scratch_operands = 0 : i64, tpu.core_type = #tpu.core_type<tc>, window_params = [{transform_indices = @transform_0, window_bounds = array<i64: 4, 128>}, {transform_indices = @transform_1, window_bounds = array<i64: 4, 128>}]} {
    %c0 = arith.constant 0 : index
    %c0_0 = arith.constant 0 : index
    %0 = vector.load %arg1[%c0, %c0_0] : memref<4x128xf32, #tpu.memory_space<vmem>>, vector<4x128xf32>
    %1 = arith.mulf %0, %0 : vector<4x128xf32>
    %cst = arith.constant 0.0356774069 : f32
    %2 = vector.broadcast %cst : f32 to vector<4x128xf32>
    %3 = arith.mulf %2, %1 : vector<4x128xf32>
    %cst_1 = arith.constant 0.797884583 : f32
    %4 = vector.broadcast %cst_1 : f32 to vector<4x128xf32>
    %5 = arith.addf %4, %3 : vector<4x128xf32>
    %6 = arith.mulf %0, %5 : vector<4x128xf32>
    %cst_2 = arith.constant 5.000000e-01 : f32
    %7 = vector.broadcast %cst_2 : f32 to vector<4x128xf32>
    %8 = arith.mulf %7, %0 : vector<4x128xf32>
    %9 = math.tanh %6 : vector<4x128xf32>
    %10 = arith.mulf %8, %9 : vector<4x128xf32>
    %11 = arith.addf %8, %10 : vector<4x128xf32>
    %c0_3 = arith.constant 0 : index
    %c0_4 = arith.constant 0 : index
    %12 = vector.load %arg2[%c0_3, %c0_4] : memref<4x128xf32, #tpu.memory_space<vmem>>, vector<4x128xf32>
    tpu.vector_store %arg2[%c0_3, %c0_4], %11 {strides = array<i32>} : memref<4x128xf32, #tpu.memory_space<vmem>>, vector<4x128xf32>,
    return
  }
  func.func @transform_0(%arg0: i32) -> (i32, i32) {
    %c0_i32 = arith.constant 0 : i32
    %c0_i32_0 = arith.constant 0 : i32
    return %arg0, %c0_i32 : i32, i32
  }
  func.func @transform_1(%arg0: i32) -> (i32, i32) {
    %c0_i32 = arith.constant 0 : i32
    %c0_i32_0 = arith.constant 0 : i32
    return %arg0, %c0_i32 : i32, i32
  }
}

</mosaic_0001>

<llo_original>
// kernel: tpu_custom_call.1
$region0: #{tpu_custom_call.1}
  #allocation0 [shape = 'u32[]', space=smem, size = 0x4, offset = 0x4, fixed_abs, tag = 'smem constant byte address 0x4 - core index']
  #allocation1 [shape = 'u32[144,128]{1,0:T(1,128)}', space=vmem, size = 0x12000, scoped, tag = 'internal scratch']
  %s0 = inlined_call_operand.hbm [shape: f32[4,128], index: 0, kind: input, shape index: {}]
  %s1 = inlined_call_operand.hbm [shape: f32[4,128], index: 1, kind: output, shape index: {}]
  %s2 = sld [smem:[#allocation0]]
  $region18: #{tpu_custom_call.1} parent=0
    _
  %s4 = ssub.s32 1, %s2
  %s5 = scalar_select 0, %s4, %s2
  $region1: #{tpu_custom_call.1} parent=0
    #allocation2 [shape = 'u8[2048]{0}', space=vmem, size = 0x800, scoped, tag = 'input window, operand 0, single buffered']
    #allocation3 [shape = 's32[1]{0}', space=sflag, size = 0x4, scoped, tag = 'scoped memory for tpu_custom_call.1']
    #allocation4 [shape = 's32[1]{0}', space=sflag, size = 0x4, scoped, tag = 'scoped memory for tpu_custom_call.1']
    #allocation5 [shape = 'u8[2048]{0}', space=vmem, size = 0x800, scoped, tag = 'output window, operand 0, single buffered']
    %6 = vsyncpa [#allocation3], 0
    %7 = vsyncpa [#allocation4], 0
    // Predicated region
    $region2: #{tpu_custom_call.1} parent=1 // pred_check
      _
    $region3: #{tpu_custom_call.1} parent=1 // pred_check_branch
      %9 = sbr.rel (0) target = $region5
    $region4: #{tpu_custom_call.1} parent=1 // pred_region
      %s11 = ssub.s32 64, 64
      %12 = vsyncadd [#allocation3], %s11
      %s14 = sshll.u32 [#allocation2], 4
      %s15 = int_to_ptr.vmem [resolvable:$true] %s14
      %17 = dma.hbm_to_vmem [thread:$0]  %s0, 64, %s15, [#allocation3]
    $region5: #{tpu_custom_call.1} parent=1 // pred_fallthru
      _
    // Predicated region
    $region6: #{tpu_custom_call.1} parent=1 // pred_check
      _
    $region7: #{tpu_custom_call.1} parent=1 // pred_check_branch
      %19 = sbr.rel (0) target = $region9
    $region8: #{tpu_custom_call.1} parent=1 // pred_region
      %20 = dma.done [#allocation3], 64
    $region9: #{tpu_custom_call.1} parent=1 // pred_fallthru
      _
    %v21 = vld [vmem:[#allocation2] sm:$0xf]
    %v22 = vmul.f32 %v21, %v21
    %v23 = vmul.f32 %v22, 0.035677407
    %v24 = vadd.f32 %v23, 0.7978846
    %v25 = vmul.f32 %v21, %v24
    %v26 = vmul.f32 %v21, 0.5
    %v27 = vtanh.pop %v25
    %v28 = vmul.f32 %v26, %v27
    %v29 = vadd.f32 %v26, %v28
    %30 = vst [vmem:[#allocation5] sm:$0xf] %v29
    // Predicated region
    $region10: #{tpu_custom_call.1} parent=1 // pred_check
      _
    $region11: #{tpu_custom_call.1} parent=1 // pred_check_branch
      %32 = sbr.rel (0) target = $region13
    $region12: #{tpu_custom_call.1} parent=1 // pred_region
      %s34 = ssub.s32 64, 64
      %35 = vsyncadd [#allocation4], %s34
      %s37 = sshll.u32 [#allocation5], 4
      %s38 = int_to_ptr.vmem [resolvable:$true] %s37
      %40 = dma.vmem_to_hbm [thread:$0]  %s38, 64, %s1, [#allocation4]
    $region13: #{tpu_custom_call.1} parent=1 // pred_fallthru
      _
    // Predicated region
    $region14: #{tpu_custom_call.1} parent=1 // pred_check
      _
    $region15: #{tpu_custom_call.1} parent=1 // pred_check_branch
      %42 = sbr.rel (0) target = $region17
    $region16: #{tpu_custom_call.1} parent=1 // pred_region
      %43 = dma.done [#allocation4], 64
    $region17: #{tpu_custom_call.1} parent=1 // pred_fallthru
      _
    %44 = vsyncpa [#allocation3], 1
    %45 = vsyncpa [#allocation4], 1

</llo_original>
